<compile_context>
chip_gen: v7x
topology: tpu7x:2x2x1
jax: 0.10.0
libtpu: 0.0.40
codegen_flags: <defaults>
</compile_context>

<pallas_src>
import functools

import jax
import jax.numpy as jnp
from jax.experimental import pallas as pl
from jax.experimental.pallas import tpu as pltpu

# ----------------------------- model config ---------------------------------
INPUT_SIZE_AVG = 16
HIDDEN_SIZE_AVG = 8
INPUT_SIZE_LAG = 7
HIDDEN_SIZE_LAG = 4
INPUT_SIZE_VS_OPPO = 12
HIDDEN_SIZE_VS_OPPO = 8
INPUT_OPPO = 14
HIDDEN_OPPO = 8
CURRENT_SIZE = 2
HIDDEN = 32          # hidden_size1 .. hidden_size9
OUT_SIZE = 1
FEAT = 95            # 2 + 16 + 16 + 7 + 7 + 7 + 12 + 14 + 14
FEAT_PAD = 128       # lane-dense streamed input (zero-padded features)
ROW_ALIGN = 16       # bf16 sublane packing => row tiles are multiples of 16

COMBINED = CURRENT_SIZE + 2 * HIDDEN_SIZE_AVG + 3 * HIDDEN_SIZE_LAG \
           + HIDDEN_SIZE_VS_OPPO + 2 * HIDDEN_OPPO  # = 54

# (shared-weight name, feature-row start, feature-row end) in torch.cat order
# (after x_current): avg60, avg30, lag1, lag2, lag3, vs_oppo, oppo_60, oppo_30
_BRANCHES = [
    ("avg",      2, 18),
    ("avg",     18, 34),
    ("lag",     34, 41),
    ("lag",     41, 48),
    ("lag",     48, 55),
    ("vs_oppo", 55, 67),
    ("oppo",    67, 81),
    ("oppo",    81, 95),
]


def _leaky(x):
    return jnp.where(x >= 0, x, 0.01 * x)


def _round_up(n, m):
    return ((n + m - 1) // m) * m


# ------------------------------- kernel --------------------------------------
def dnn_kernel(x_ref, wfront_ref, bfront_ref, slope_ref, w1_ref, b1_ref,
               whid_ref, bhid_ref, wout_ref, bout_ref, o_ref):
    x = x_ref[...]                                      # [TM, 128] bf16

    # Fused front end: one block-diagonal bf16 matmul (f32 accumulation)
    # covers the x_current identity pass-through plus all eight branch
    # Linear layers.
    comb = jnp.dot(x, wfront_ref[...],
                   preferred_element_type=jnp.float32) + bfront_ref[...]
    # Column-wise leaky-ReLU via a precomputed slope row: 1.0 on the two
    # x_current pass-through columns (no activation), 0.01 on branch columns.
    comb = jnp.where(comb >= 0, comb, comb * slope_ref[...])

    # l1 .. l8: bf16 operands, f32 accumulation, bf16 inter-layer activations.
    h = comb.astype(jnp.bfloat16)                       # [TM, 54] bf16
    h = _leaky(jnp.dot(h, w1_ref[...],
                       preferred_element_type=jnp.float32)
               + b1_ref[...]).astype(jnp.bfloat16)      # [TM, 32] bf16
    for j in range(7):                                  # l2 .. l8
        h = _leaky(jnp.dot(h, whid_ref[j],
                           preferred_element_type=jnp.float32)
                   + bhid_ref[j:j + 1, :]).astype(jnp.bfloat16)

    # l9 output stays f32: it feeds the VPU/XLU out layer below.
    h9 = _leaky(jnp.dot(h, whid_ref[7],
                        preferred_element_type=jnp.float32)
                + bhid_ref[7:8, :])                     # [TM, 32] f32

    # out layer (32 -> 1): VPU multiply + lane reduce instead of an N=1 MXU
    # pass (the MXU is the saturated unit; VPU/XLU have slack).
    o_ref[...] = (jnp.sum(h9 * wout_ref[...], axis=-1, keepdims=True)
                  + bout_ref[...])


# ------------------------------ parameters -----------------------------------
def init_params(key):
    """Deterministic synthetic params. Linear(in, out) stored as (W[out,in], b[out])."""
    def linear(k, fin, fout):
        kw, kb = jax.random.split(k)
        scale = 1.0 / jnp.sqrt(jnp.float32(fin))
        w = jax.random.uniform(kw, (fout, fin), jnp.float32, -scale, scale)
        b = jax.random.uniform(kb, (fout,), jnp.float32, -scale, scale)
        return w, b

    keys = jax.random.split(key, 14)
    p = {}
    p["avg"] = linear(keys[0], INPUT_SIZE_AVG, HIDDEN_SIZE_AVG)
    p["lag"] = linear(keys[1], INPUT_SIZE_LAG, HIDDEN_SIZE_LAG)
    p["vs_oppo"] = linear(keys[2], INPUT_SIZE_VS_OPPO, HIDDEN_SIZE_VS_OPPO)
    p["oppo"] = linear(keys[3], INPUT_OPPO, HIDDEN_OPPO)
    p["l1"] = linear(keys[4], COMBINED, HIDDEN)
    for i in range(2, 10):
        p[f"l{i}"] = linear(keys[3 + i], HIDDEN, HIDDEN)
    p["out"] = linear(keys[13], HIDDEN, OUT_SIZE)
    return p


def pack_params_for_kernel(p):
    """Block-diagonal front-end weight (feature-padded) + consolidated params."""
    wfront = jnp.zeros((FEAT_PAD, COMBINED), jnp.float32)
    bfront = jnp.zeros((1, COMBINED), jnp.float32)
    # Identity block for x_current (cols 0:2), zero bias. (Exact in bf16.)
    wfront = wfront.at[0:CURRENT_SIZE, 0:CURRENT_SIZE].set(
        jnp.eye(CURRENT_SIZE, dtype=jnp.float32))
    col = CURRENT_SIZE
    for name, r0, r1 in _BRANCHES:
        w, b = p[name]                     # w: [out, in], b: [out]
        out_dim = w.shape[0]
        wfront = wfront.at[r0:r1, col:col + out_dim].set(w.T)
        bfront = bfront.at[0, col:col + out_dim].set(b)
        col += out_dim
    assert col == COMBINED

    # Per-column leaky slope: 1.0 on x_current pass-through, 0.01 elsewhere.
    slope = jnp.concatenate(
        [jnp.ones((1, CURRENT_SIZE), jnp.float32),
         jnp.full((1, COMBINED - CURRENT_SIZE), 0.01, jnp.float32)], axis=1)

    w1 = p["l1"][0].T.astype(jnp.bfloat16)                       # [54, 32]
    b1 = p["l1"][1].reshape(1, -1)                               # [1, 32] f32
    whid = jnp.stack(
        [p[f"l{i}"][0].T for i in range(2, 10)]).astype(jnp.bfloat16)  # [8,32,32]
    bhid = jnp.stack([p[f"l{i}"][1] for i in range(2, 10)])      # [8, 32] f32
    wout = p["out"][0]                                           # [1, 32] f32 row
    bout = p["out"][1].reshape(1, 1)                             # [1, 1] f32
    return (wfront.astype(jnp.bfloat16), bfront, slope, w1, b1,
            whid, bhid, wout, bout)


# ------------------------------- wrapper --------------------------------------
def _choose_row_tiling(M, tm):
    """Balanced row tiles: padding bounded to <ROW_ALIGN rows per tile and an
    even tile count (>=2) whenever there is enough work, so v7x's two
    TensorCores both get a share under dimension_semantics=("parallel",)."""
    n = pl.cdiv(M, tm)
    if M >= 2 * ROW_ALIGN:
        n = max(n, 2)
        if n % 2:
            n += 1
    tile = _round_up(pl.cdiv(M, n), ROW_ALIGN)
    return n, tile


@functools.partial(jax.jit, static_argnames=("tm",))
def dnn_forward(X, packed, tm=4096):
    B, S, F = X.shape
    M = B * S
    n_tiles, TM = _choose_row_tiling(M, tm)
    M_pad = n_tiles * TM

    # Stream X as bf16 (the matmul operand dtype) with features zero-padded to
    # a full 128-lane row: halves HBM bytes vs f32 and gives unmasked loads /
    # dense DMA descriptors. Per-tile VMEM footprint stays well under the
    # scoped defaults on v5e/v6e/v7x at the default tile size.
    x2d = X.reshape(M, F).astype(jnp.bfloat16)
    x2d = jnp.pad(x2d, ((0, M_pad - M), (0, FEAT_PAD - F)))

    def const_spec(a):
        nd = a.ndim
        return pl.BlockSpec(a.shape, lambda i, _nd=nd: (0,) * _nd)

    out2d = pl.pallas_call(
        dnn_kernel,
        out_shape=jax.ShapeDtypeStruct((M_pad, OUT_SIZE), jnp.float32),
        grid=(n_tiles,),
        in_specs=[pl.BlockSpec((TM, FEAT_PAD), lambda i: (i, 0))]
                 + [const_spec(a) for a in packed],
        out_specs=pl.BlockSpec((TM, OUT_SIZE), lambda i: (i, 0)),
        compiler_params=pltpu.CompilerParams(
            dimension_semantics=("parallel",)),
    )(x2d, *packed)
    # TODO(synk): output kept [M, 1] (lane-sparse masked stores). The vst slot
    # has large slack vs the MXU-bound dot chain, and a lane-dense output slab
    # would need an in-kernel sublane->lane relayout, so it was left as-is.
    return out2d[:M].reshape(B, S, OUT_SIZE)


# ---------------------------- pure-JAX reference ------------------------------
def dnn_reference(X, p):
    def lin(v, name):
        w, b = p[name]
        return v @ w.T + b

    x_current = X[:, :, 0:2]
    out_avg60 = _leaky(lin(X[:, :, 2:18], "avg"))
    out_avg30 = _leaky(lin(X[:, :, 18:34], "avg"))
    out_lag1 = _leaky(lin(X[:, :, 34:41], "lag"))
    out_lag2 = _leaky(lin(X[:, :, 41:48], "lag"))
    out_lag3 = _leaky(lin(X[:, :, 48:55], "lag"))
    out_vs_oppo = _leaky(lin(X[:, :, 55:67], "vs_oppo"))
    out_oppo_60 = _leaky(lin(X[:, :, 67:81], "oppo"))
    out_oppo_30 = _leaky(lin(X[:, :, 81:95], "oppo"))
    combined = jnp.concatenate(
        (x_current, out_avg60, out_avg30, out_lag1, out_lag2, out_lag3,
         out_vs_oppo, out_oppo_60, out_oppo_30), axis=2)
    h = combined
    for name in ("l1", "l2", "l3", "l4", "l5", "l6", "l7", "l8", "l9"):
        h = _leaky(lin(h, name))
    return lin(h, "out")


# --------------------------------- main ---------------------------------------
if __name__ == "__main__":
    key = jax.random.PRNGKey(0)
    kx, kp = jax.random.split(key)

    B, S = 2, 8
    X = jax.random.normal(kx, (B, S, FEAT), jnp.float32)

    params = init_params(kp)
    packed = pack_params_for_kernel(params)

    out = dnn_forward(X, packed)
    out = jax.block_until_ready(out)

    ref = dnn_reference(X, params)
    assert out.shape == (B, S, OUT_SIZE)
    # Tolerance loosened vs the pure-f32 reference to cover bf16 operand
    # rounding accumulated over the 10-dot chain (observed error is ~1e-3).
    assert jnp.allclose(out, ref, rtol=2e-2, atol=2e-2), "mismatch vs JAX reference"

    print("KERNEL_OK")
</pallas_src>

<mosaic_0001>
module attributes {stable_mosaic.version = 11 : i64} {
  func.func @dnn_kernel(%arg0: i32, %arg1: memref<16x128xbf16, #tpu.memory_space<vmem>>, %arg2: memref<128x54xbf16, #tpu.memory_space<vmem>>, %arg3: memref<1x54xf32, #tpu.memory_space<vmem>>, %arg4: memref<1x54xf32, #tpu.memory_space<vmem>>, %arg5: memref<54x32xbf16, #tpu.memory_space<vmem>>, %arg6: memref<1x32xf32, #tpu.memory_space<vmem>>, %arg7: memref<8x32x32xbf16, #tpu.memory_space<vmem>>, %arg8: memref<8x32xf32, #tpu.memory_space<vmem>>, %arg9: memref<1x32xf32, #tpu.memory_space<vmem>>, %arg10: memref<1x1xf32, #tpu.memory_space<vmem>>, %arg11: memref<16x1xf32, #tpu.memory_space<vmem>>) attributes {dimension_semantics = [#tpu.dimension_semantics<parallel>], iteration_bounds = array<i64: 1>, scalar_prefetch = 0 : i64, scratch_operands = 0 : i64, tpu.core_type = #tpu.core_type<tc>, window_params = [{transform_indices = @transform_0, window_bounds = array<i64: 16, 128>}, {pipeline_mode = #tpu.pipeline_mode<synchronous>, transform_indices = @transform_1, window_bounds = array<i64: 128, 54>}, {pipeline_mode = #tpu.pipeline_mode<synchronous>, transform_indices = @transform_2, window_bounds = array<i64: 1, 54>}, {pipeline_mode = #tpu.pipeline_mode<synchronous>, transform_indices = @transform_3, window_bounds = array<i64: 1, 54>}, {pipeline_mode = #tpu.pipeline_mode<synchronous>, transform_indices = @transform_4, window_bounds = array<i64: 54, 32>}, {pipeline_mode = #tpu.pipeline_mode<synchronous>, transform_indices = @transform_5, window_bounds = array<i64: 1, 32>}, {pipeline_mode = #tpu.pipeline_mode<synchronous>, transform_indices = @transform_6, window_bounds = array<i64: 8, 32, 32>}, {pipeline_mode = #tpu.pipeline_mode<synchronous>, transform_indices = @transform_7, window_bounds = array<i64: 8, 32>}, {pipeline_mode = #tpu.pipeline_mode<synchronous>, transform_indices = @transform_8, window_bounds = array<i64: 1, 32>}, {pipeline_mode = #tpu.pipeline_mode<synchronous>, transform_indices = @transform_9, window_bounds = array<i64: 1, 1>}, {transform_indices = @transform_10, window_bounds = array<i64: 16, 1>}]} {
    %c0 = arith.constant 0 : index
    %c0_0 = arith.constant 0 : index
    %0 = vector.load %arg1[%c0, %c0_0] : memref<16x128xbf16, #tpu.memory_space<vmem>>, vector<16x128xbf16>
    %c0_1 = arith.constant 0 : index
    %c0_2 = arith.constant 0 : index
    %1 = vector.load %arg2[%c0_1, %c0_2] : memref<128x54xbf16, #tpu.memory_space<vmem>>, vector<128x54xbf16>
    %cst = arith.constant dense<0.000000e+00> : vector<16x54xf32>
    %2 = tpu.matmul %0, %1, %cst {dimension_numbers = #tpu.dot_dimension_numbers<[1], [0], [0], [1], [0, 0, 1, 1], [], []>} : vector<16x128xbf16>, vector<128x54xbf16>, vector<16x54xf32> -> vector<16x54xf32>
    %c0_3 = arith.constant 0 : index
    %c0_4 = arith.constant 0 : index
    %3 = vector.load %arg3[%c0_3, %c0_4] : memref<1x54xf32, #tpu.memory_space<vmem>>, vector<1x54xf32>
    %4 = vector.broadcast %3 : vector<1x54xf32> to vector<16x54xf32>
    %5 = arith.addf %2, %4 : vector<16x54xf32>
    %cst_5 = arith.constant 0.000000e+00 : f32
    %6 = vector.broadcast %cst_5 : f32 to vector<16x54xf32>
    %7 = arith.cmpf oge, %5, %6 : vector<16x54xf32>
    %c0_6 = arith.constant 0 : index
    %c0_7 = arith.constant 0 : index
    %8 = vector.load %arg4[%c0_6, %c0_7] : memref<1x54xf32, #tpu.memory_space<vmem>>, vector<1x54xf32>
    %9 = vector.broadcast %8 : vector<1x54xf32> to vector<16x54xf32>
    %10 = arith.mulf %5, %9 : vector<16x54xf32>
    %11 = arith.select %7, %5, %10 : vector<16x54xi1>, vector<16x54xf32>
    %12 = arith.truncf %11 : vector<16x54xf32> to vector<16x54xbf16>
    %c0_8 = arith.constant 0 : index
    %c0_9 = arith.constant 0 : index
    %13 = vector.load %arg5[%c0_8, %c0_9] : memref<54x32xbf16, #tpu.memory_space<vmem>>, vector<54x32xbf16>
    %cst_10 = arith.constant dense<0.000000e+00> : vector<16x32xf32>
    %14 = tpu.matmul %12, %13, %cst_10 {dimension_numbers = #tpu.dot_dimension_numbers<[1], [0], [0], [1], [0, 0, 1, 1], [], []>} : vector<16x54xbf16>, vector<54x32xbf16>, vector<16x32xf32> -> vector<16x32xf32>
    %c0_11 = arith.constant 0 : index
    %c0_12 = arith.constant 0 : index
    %15 = vector.load %arg6[%c0_11, %c0_12] : memref<1x32xf32, #tpu.memory_space<vmem>>, vector<1x32xf32>
    %16 = vector.broadcast %15 : vector<1x32xf32> to vector<16x32xf32>
    %17 = arith.addf %14, %16 : vector<16x32xf32>
    %cst_13 = arith.constant 0.000000e+00 : f32
    %18 = vector.broadcast %cst_13 : f32 to vector<16x32xf32>
    %19 = arith.cmpf oge, %17, %18 : vector<16x32xf32>
    %cst_14 = arith.constant 0.00999999977 : f32
    %20 = vector.broadcast %cst_14 : f32 to vector<16x32xf32>
    %21 = arith.mulf %20, %17 : vector<16x32xf32>
    %22 = arith.select %19, %17, %21 : vector<16x32xi1>, vector<16x32xf32>
    %23 = arith.truncf %22 : vector<16x32xf32> to vector<16x32xbf16>
    %c0_15 = arith.constant 0 : index
    %c0_16 = arith.constant 0 : index
    %c0_17 = arith.constant 0 : index
    %24 = vector.load %arg7[%c0_15, %c0_16, %c0_17] : memref<8x32x32xbf16, #tpu.memory_space<vmem>>, vector<1x32x32xbf16>
    %25 = vector.shape_cast %24 : vector<1x32x32xbf16> to vector<32x32xbf16>
    %cst_18 = arith.constant dense<0.000000e+00> : vector<16x32xf32>
    %26 = tpu.matmul %23, %25, %cst_18 {dimension_numbers = #tpu.dot_dimension_numbers<[1], [0], [0], [1], [0, 0, 1, 1], [], []>} : vector<16x32xbf16>, vector<32x32xbf16>, vector<16x32xf32> -> vector<16x32xf32>
    %c0_19 = arith.constant 0 : index
    %c0_20 = arith.constant 0 : index
    %27 = vector.load %arg8[%c0_19, %c0_20] : memref<8x32xf32, #tpu.memory_space<vmem>>, vector<1x32xf32>
    %28 = vector.broadcast %27 : vector<1x32xf32> to vector<16x32xf32>
    %29 = arith.addf %26, %28 : vector<16x32xf32>
    %cst_21 = arith.constant 0.000000e+00 : f32
    %30 = vector.broadcast %cst_21 : f32 to vector<16x32xf32>
    %31 = arith.cmpf oge, %29, %30 : vector<16x32xf32>
    %cst_22 = arith.constant 0.00999999977 : f32
    %32 = vector.broadcast %cst_22 : f32 to vector<16x32xf32>
    %33 = arith.mulf %32, %29 : vector<16x32xf32>
    %34 = arith.select %31, %29, %33 : vector<16x32xi1>, vector<16x32xf32>
    %35 = arith.truncf %34 : vector<16x32xf32> to vector<16x32xbf16>
    %c1 = arith.constant 1 : index
    %c0_23 = arith.constant 0 : index
    %c0_24 = arith.constant 0 : index
    %36 = vector.load %arg7[%c1, %c0_23, %c0_24] : memref<8x32x32xbf16, #tpu.memory_space<vmem>>, vector<1x32x32xbf16>
    %37 = vector.shape_cast %36 : vector<1x32x32xbf16> to vector<32x32xbf16>
    %cst_25 = arith.constant dense<0.000000e+00> : vector<16x32xf32>
    %38 = tpu.matmul %35, %37, %cst_25 {dimension_numbers = #tpu.dot_dimension_numbers<[1], [0], [0], [1], [0, 0, 1, 1], [], []>} : vector<16x32xbf16>, vector<32x32xbf16>, vector<16x32xf32> -> vector<16x32xf32>
    %c1_26 = arith.constant 1 : index
    %c0_27 = arith.constant 0 : index
    %39 = vector.load %arg8[%c1_26, %c0_27] : memref<8x32xf32, #tpu.memory_space<vmem>>, vector<1x32xf32>
    %40 = vector.broadcast %39 : vector<1x32xf32> to vector<16x32xf32>
    %41 = arith.addf %38, %40 : vector<16x32xf32>
    %cst_28 = arith.constant 0.000000e+00 : f32
    %42 = vector.broadcast %cst_28 : f32 to vector<16x32xf32>
    %43 = arith.cmpf oge, %41, %42 : vector<16x32xf32>
    %cst_29 = arith.constant 0.00999999977 : f32
    %44 = vector.broadcast %cst_29 : f32 to vector<16x32xf32>
    %45 = arith.mulf %44, %41 : vector<16x32xf32>
    %46 = arith.select %43, %41, %45 : vector<16x32xi1>, vector<16x32xf32>
    %47 = arith.truncf %46 : vector<16x32xf32> to vector<16x32xbf16>
    %c2 = arith.constant 2 : index
    %c0_30 = arith.constant 0 : index
    %c0_31 = arith.constant 0 : index
    %48 = vector.load %arg7[%c2, %c0_30, %c0_31] : memref<8x32x32xbf16, #tpu.memory_space<vmem>>, vector<1x32x32xbf16>
    %49 = vector.shape_cast %48 : vector<1x32x32xbf16> to vector<32x32xbf16>
    %cst_32 = arith.constant dense<0.000000e+00> : vector<16x32xf32>
    %50 = tpu.matmul %47, %49, %cst_32 {dimension_numbers = #tpu.dot_dimension_numbers<[1], [0], [0], [1], [0, 0, 1, 1], [], []>} : vector<16x32xbf16>, vector<32x32xbf16>, vector<16x32xf32> -> vector<16x32xf32>
    %c2_33 = arith.constant 2 : index
    %c0_34 = arith.constant 0 : index
    %51 = vector.load %arg8[%c2_33, %c0_34] : memref<8x32xf32, #tpu.memory_space<vmem>>, vector<1x32xf32>
    %52 = vector.broadcast %51 : vector<1x32xf32> to vector<16x32xf32>
    %53 = arith.addf %50, %52 : vector<16x32xf32>
    %cst_35 = arith.constant 0.000000e+00 : f32
    %54 = vector.broadcast %cst_35 : f32 to vector<16x32xf32>
    %55 = arith.cmpf oge, %53, %54 : vector<16x32xf32>
    %cst_36 = arith.constant 0.00999999977 : f32
    %56 = vector.broadcast %cst_36 : f32 to vector<16x32xf32>
    %57 = arith.mulf %56, %53 : vector<16x32xf32>
    %58 = arith.select %55, %53, %57 : vector<16x32xi1>, vector<16x32xf32>
    %59 = arith.truncf %58 : vector<16x32xf32> to vector<16x32xbf16>
    %c3 = arith.constant 3 : index
    %c0_37 = arith.constant 0 : index
    %c0_38 = arith.constant 0 : index
    %60 = vector.load %arg7[%c3, %c0_37, %c0_38] : memref<8x32x32xbf16, #tpu.memory_space<vmem>>, vector<1x32x32xbf16>
    %61 = vector.shape_cast %60 : vector<1x32x32xbf16> to vector<32x32xbf16>
    %cst_39 = arith.constant dense<0.000000e+00> : vector<16x32xf32>
    %62 = tpu.matmul %59, %61, %cst_39 {dimension_numbers = #tpu.dot_dimension_numbers<[1], [0], [0], [1], [0, 0, 1, 1], [], []>} : vector<16x32xbf16>, vector<32x32xbf16>, vector<16x32xf32> -> vector<16x32xf32>
    %c3_40 = arith.constant 3 : index
    %c0_41 = arith.constant 0 : index
    %63 = vector.load %arg8[%c3_40, %c0_41] : memref<8x32xf32, #tpu.memory_space<vmem>>, vector<1x32xf32>
    %64 = vector.broadcast %63 : vector<1x32xf32> to vector<16x32xf32>
    %65 = arith.addf %62, %64 : vector<16x32xf32>
    %cst_42 = arith.constant 0.000000e+00 : f32
    %66 = vector.broadcast %cst_42 : f32 to vector<16x32xf32>
    %67 = arith.cmpf oge, %65, %66 : vector<16x32xf32>
    %cst_43 = arith.constant 0.00999999977 : f32
    %68 = vector.broadcast %cst_43 : f32 to vector<16x32xf32>
    %69 = arith.mulf %68, %65 : vector<16x32xf32>
    %70 = arith.select %67, %65, %69 : vector<16x32xi1>, vector<16x32xf32>
    %71 = arith.truncf %70 : vector<16x32xf32> to vector<16x32xbf16>
    %c4 = arith.constant 4 : index
    %c0_44 = arith.constant 0 : index
    %c0_45 = arith.constant 0 : index
    %72 = vector.load %arg7[%c4, %c0_44, %c0_45] : memref<8x32x32xbf16, #tpu.memory_space<vmem>>, vector<1x32x32xbf16>
    %73 = vector.shape_cast %72 : vector<1x32x32xbf16> to vector<32x32xbf16>
    %cst_46 = arith.constant dense<0.000000e+00> : vector<16x32xf32>
    %74 = tpu.matmul %71, %73, %cst_46 {dimension_numbers = #tpu.dot_dimension_numbers<[1], [0], [0], [1], [0, 0, 1, 1], [], []>} : vector<16x32xbf16>, vector<32x32xbf16>, vector<16x32xf32> -> vector<16x32xf32>
    %c4_47 = arith.constant 4 : index
    %c0_48 = arith.constant 0 : index
    %75 = vector.load %arg8[%c4_47, %c0_48] : memref<8x32xf32, #tpu.memory_space<vmem>>, vector<1x32xf32>
    %76 = vector.broadcast %75 : vector<1x32xf32> to vector<16x32xf32>
    %77 = arith.addf %74, %76 : vector<16x32xf32>
    %cst_49 = arith.constant 0.000000e+00 : f32
    %78 = vector.broadcast %cst_49 : f32 to vector<16x32xf32>
    %79 = arith.cmpf oge, %77, %78 : vector<16x32xf32>
    %cst_50 = arith.constant 0.00999999977 : f32
    %80 = vector.broadcast %cst_50 : f32 to vector<16x32xf32>
    %81 = arith.mulf %80, %77 : vector<16x32xf32>
    %82 = arith.select %79, %77, %81 : vector<16x32xi1>, vector<16x32xf32>
    %83 = arith.truncf %82 : vector<16x32xf32> to vector<16x32xbf16>
    %c5 = arith.constant 5 : index
    %c0_51 = arith.constant 0 : index
    %c0_52 = arith.constant 0 : index
    %84 = vector.load %arg7[%c5, %c0_51, %c0_52] : memref<8x32x32xbf16, #tpu.memory_space<vmem>>, vector<1x32x32xbf16>
    %85 = vector.shape_cast %84 : vector<1x32x32xbf16> to vector<32x32xbf16>
    %cst_53 = arith.constant dense<0.000000e+00> : vector<16x32xf32>
    %86 = tpu.matmul %83, %85, %cst_53 {dimension_numbers = #tpu.dot_dimension_numbers<[1], [0], [0], [1], [0, 0, 1, 1], [], []>} : vector<16x32xbf16>, vector<32x32xbf16>, vector<16x32xf32> -> vector<16x32xf32>
    %c5_54 = arith.constant 5 : index
    %c0_55 = arith.constant 0 : index
    %87 = vector.load %arg8[%c5_54, %c0_55] : memref<8x32xf32, #tpu.memory_space<vmem>>, vector<1x32xf32>
    %88 = vector.broadcast %87 : vector<1x32xf32> to vector<16x32xf32>
    %89 = arith.addf %86, %88 : vector<16x32xf32>
    %cst_56 = arith.constant 0.000000e+00 : f32
    %90 = vector.broadcast %cst_56 : f32 to vector<16x32xf32>
    %91 = arith.cmpf oge, %89, %90 : vector<16x32xf32>
    %cst_57 = arith.constant 0.00999999977 : f32
    %92 = vector.broadcast %cst_57 : f32 to vector<16x32xf32>
    %93 = arith.mulf %92, %89 : vector<16x32xf32>
    %94 = arith.select %91, %89, %93 : vector<16x32xi1>, vector<16x32xf32>
    %95 = arith.truncf %94 : vector<16x32xf32> to vector<16x32xbf16>
    %c6 = arith.constant 6 : index
    %c0_58 = arith.constant 0 : index
    %c0_59 = arith.constant 0 : index
    %96 = vector.load %arg7[%c6, %c0_58, %c0_59] : memref<8x32x32xbf16, #tpu.memory_space<vmem>>, vector<1x32x32xbf16>
    %97 = vector.shape_cast %96 : vector<1x32x32xbf16> to vector<32x32xbf16>
    %cst_60 = arith.constant dense<0.000000e+00> : vector<16x32xf32>
    %98 = tpu.matmul %95, %97, %cst_60 {dimension_numbers = #tpu.dot_dimension_numbers<[1], [0], [0], [1], [0, 0, 1, 1], [], []>} : vector<16x32xbf16>, vector<32x32xbf16>, vector<16x32xf32> -> vector<16x32xf32>
    %c6_61 = arith.constant 6 : index
    %c0_62 = arith.constant 0 : index
    %99 = vector.load %arg8[%c6_61, %c0_62] : memref<8x32xf32, #tpu.memory_space<vmem>>, vector<1x32xf32>
    %100 = vector.broadcast %99 : vector<1x32xf32> to vector<16x32xf32>
    %101 = arith.addf %98, %100 : vector<16x32xf32>
    %cst_63 = arith.constant 0.000000e+00 : f32
    %102 = vector.broadcast %cst_63 : f32 to vector<16x32xf32>
    %103 = arith.cmpf oge, %101, %102 : vector<16x32xf32>
    %cst_64 = arith.constant 0.00999999977 : f32
    %104 = vector.broadcast %cst_64 : f32 to vector<16x32xf32>
    %105 = arith.mulf %104, %101 : vector<16x32xf32>
    %106 = arith.select %103, %101, %105 : vector<16x32xi1>, vector<16x32xf32>
    %107 = arith.truncf %106 : vector<16x32xf32> to vector<16x32xbf16>
    %c7 = arith.constant 7 : index
    %c0_65 = arith.constant 0 : index
    %c0_66 = arith.constant 0 : index
    %108 = vector.load %arg7[%c7, %c0_65, %c0_66] : memref<8x32x32xbf16, #tpu.memory_space<vmem>>, vector<1x32x32xbf16>
    %109 = vector.shape_cast %108 : vector<1x32x32xbf16> to vector<32x32xbf16>
    %cst_67 = arith.constant dense<0.000000e+00> : vector<16x32xf32>
    %110 = tpu.matmul %107, %109, %cst_67 {dimension_numbers = #tpu.dot_dimension_numbers<[1], [0], [0], [1], [0, 0, 1, 1], [], []>} : vector<16x32xbf16>, vector<32x32xbf16>, vector<16x32xf32> -> vector<16x32xf32>
    %c7_68 = arith.constant 7 : index
    %c0_69 = arith.constant 0 : index
    %111 = vector.load %arg8[%c7_68, %c0_69] : memref<8x32xf32, #tpu.memory_space<vmem>>, vector<1x32xf32>
    %112 = vector.broadcast %111 : vector<1x32xf32> to vector<16x32xf32>
    %113 = arith.addf %110, %112 : vector<16x32xf32>
    %cst_70 = arith.constant 0.000000e+00 : f32
    %114 = vector.broadcast %cst_70 : f32 to vector<16x32xf32>
    %115 = arith.cmpf oge, %113, %114 : vector<16x32xf32>
    %cst_71 = arith.constant 0.00999999977 : f32
    %116 = vector.broadcast %cst_71 : f32 to vector<16x32xf32>
    %117 = arith.mulf %116, %113 : vector<16x32xf32>
    %118 = arith.select %115, %113, %117 : vector<16x32xi1>, vector<16x32xf32>
    %c0_72 = arith.constant 0 : index
    %c0_73 = arith.constant 0 : index
    %119 = vector.load %arg9[%c0_72, %c0_73] : memref<1x32xf32, #tpu.memory_space<vmem>>, vector<1x32xf32>
    %120 = vector.broadcast %119 : vector<1x32xf32> to vector<16x32xf32>
    %121 = arith.mulf %118, %120 : vector<16x32xf32>
    %cst_74 = arith.constant dense<0.000000e+00> : vector<16xf32>
    %122 = vector.multi_reduction <add>, %121, %cst_74 [1] : vector<16x32xf32> to vector<16xf32>
    %123 = vector.shape_cast %122 : vector<16xf32> to vector<16x1xf32>
    %c0_75 = arith.constant 0 : index
    %c0_76 = arith.constant 0 : index
    %124 = vector.load %arg10[%c0_75, %c0_76] : memref<1x1xf32, #tpu.memory_space<vmem>>, vector<1x1xf32>
    %125 = vector.broadcast %124 : vector<1x1xf32> to vector<16x1xf32>
    %126 = arith.addf %123, %125 : vector<16x1xf32>
    %c0_77 = arith.constant 0 : index
    %c0_78 = arith.constant 0 : index
    %127 = vector.load %arg11[%c0_77, %c0_78] : memref<16x1xf32, #tpu.memory_space<vmem>>, vector<16x1xf32>
    tpu.vector_store %arg11[%c0_77, %c0_78], %126 {strides = array<i32>} : memref<16x1xf32, #tpu.memory_space<vmem>>, vector<16x1xf32>,
    return
  }
  func.func @transform_0(%arg0: i32) -> (i32, i32) {
    %c0_i32 = arith.constant 0 : i32
    %c0_i32_0 = arith.constant 0 : i32
    return %arg0, %c0_i32 : i32, i32
  }
  func.func @transform_1(%arg0: i32) -> (i32, i32) {
    %c0_i32 = arith.constant 0 : i32
    %c0_i32_0 = arith.constant 0 : i32
    %c0_i32_1 = arith.constant 0 : i32
    return %c0_i32, %c0_i32_0 : i32, i32
  }
  func.func @transform_2(%arg0: i32) -> (i32, i32) {
    %c0_i32 = arith.constant 0 : i32
    %c0_i32_0 = arith.constant 0 : i32
    %c0_i32_1 = arith.constant 0 : i32
    return %c0_i32, %c0_i32_0 : i32, i32
  }
  func.func @transform_3(%arg0: i32) -> (i32, i32) {
    %c0_i32 = arith.constant 0 : i32
    %c0_i32_0 = arith.constant 0 : i32
    %c0_i32_1 = arith.constant 0 : i32
    return %c0_i32, %c0_i32_0 : i32, i32
  }
  func.func @transform_4(%arg0: i32) -> (i32, i32) {
    %c0_i32 = arith.constant 0 : i32
    %c0_i32_0 = arith.constant 0 : i32
    %c0_i32_1 = arith.constant 0 : i32
    return %c0_i32, %c0_i32_0 : i32, i32
  }
  func.func @transform_5(%arg0: i32) -> (i32, i32) {
    %c0_i32 = arith.constant 0 : i32
    %c0_i32_0 = arith.constant 0 : i32
    %c0_i32_1 = arith.constant 0 : i32
    return %c0_i32, %c0_i32_0 : i32, i32
  }
  func.func @transform_6(%arg0: i32) -> (i32, i32, i32) {
    %c0_i32 = arith.constant 0 : i32
    %c0_i32_0 = arith.constant 0 : i32
    %c0_i32_1 = arith.constant 0 : i32
    %c0_i32_2 = arith.constant 0 : i32
    return %c0_i32, %c0_i32_0, %c0_i32_1 : i32, i32, i32
  }
  func.func @transform_7(%arg0: i32) -> (i32, i32) {
    %c0_i32 = arith.constant 0 : i32
    %c0_i32_0 = arith.constant 0 : i32
    %c0_i32_1 = arith.constant 0 : i32
    return %c0_i32, %c0_i32_0 : i32, i32
  }
  func.func @transform_8(%arg0: i32) -> (i32, i32) {
    %c0_i32 = arith.constant 0 : i32
    %c0_i32_0 = arith.constant 0 : i32
    %c0_i32_1 = arith.constant 0 : i32
    return %c0_i32, %c0_i32_0 : i32, i32
  }
  func.func @transform_9(%arg0: i32) -> (i32, i32) {
    %c0_i32 = arith.constant 0 : i32
    %c0_i32_0 = arith.constant 0 : i32
    %c0_i32_1 = arith.constant 0 : i32
    return %c0_i32, %c0_i32_0 : i32, i32
  }
  func.func @transform_10(%arg0: i32) -> (i32, i32) {
    %c0_i32 = arith.constant 0 : i32
    %c0_i32_0 = arith.constant 0 : i32
    return %arg0, %c0_i32 : i32, i32
  }
}

</mosaic_0001>

<llo_original>
// kernel: dnn_forward.1
$region0: #{dnn_forward.1}
  #allocation0 [shape = 'u32[]', space=smem, size = 0x4, offset = 0x4, fixed_abs, tag = 'smem constant byte address 0x4 - core index']
  #allocation1 [shape = 'u32[144,128]{1,0:T(1,128)}', space=vmem, size = 0x12000, scoped, tag = 'internal scratch']
  #allocation2 [shape = 'f32[1,1]{1,0:T(1,128)S(1)}', space=vmem, size = 0x200, scoped, tag = 'scoped memory for dnn_forward.1']
  %s0 = inlined_call_operand.vmem [shape: bf16[16,128], index: 0, kind: input, shape index: {}]
  %s1 = inlined_call_operand.vmem [shape: bf16[128,54], index: 1, kind: input, shape index: {}]
  %s2 = inlined_call_operand.vmem [shape: f32[1,54], index: 2, kind: input, shape index: {}]
  %s3 = inlined_call_operand.vmem [shape: f32[1,54], index: 3, kind: input, shape index: {}]
  %s4 = inlined_call_operand.vmem [shape: bf16[54,32], index: 4, kind: input, shape index: {}]
  %s5 = inlined_call_operand.vmem [shape: f32[1,32], index: 5, kind: input, shape index: {}]
  %s6 = inlined_call_operand.vmem [shape: bf16[8,32,32], index: 6, kind: input, shape index: {}]
  %s7 = inlined_call_operand.vmem [shape: f32[8,32], index: 7, kind: input, shape index: {}]
  %s8 = inlined_call_operand.vmem [shape: f32[1,32], index: 8, kind: input, shape index: {}]
  %s9 = inlined_call_operand.<no memory space> [shape: f32[1,1], index: 9, kind: input, shape index: {}]
  %s10 = inlined_call_operand.vmem [shape: f32[16,1], index: 10, kind: output, shape index: {}]
  %s11 = sld [smem:[#allocation0]]
  $region50: #{dnn_forward.1} parent=0
    _
  %s13 = ssub.s32 1, %s11
  %s14 = scalar_select 0, %s13, %s11
  %v15 = vstv %s9
  %16 = vst [vmem:[#allocation2] sm:$0x1] %v15
  // Predicated region
  $region2: #{dnn_forward.1} parent=0 // pred_check
    _
  $region3: #{dnn_forward.1} parent=0 // pred_check_branch
    %18 = sbr.rel (0) target = $region5
  $region4: #{dnn_forward.1} parent=0 // pred_region
    _
  $region5: #{dnn_forward.1} parent=0 // pred_fallthru
    _
  // Predicated region
  $region6: #{dnn_forward.1} parent=0 // pred_check
    _
  $region7: #{dnn_forward.1} parent=0 // pred_check_branch
    %20 = sbr.rel (0) target = $region9
  $region8: #{dnn_forward.1} parent=0 // pred_region
    _
  $region9: #{dnn_forward.1} parent=0 // pred_fallthru
    _
  // Predicated region
  $region10: #{dnn_forward.1} parent=0 // pred_check
    _
  $region11: #{dnn_forward.1} parent=0 // pred_check_branch
    %22 = sbr.rel (0) target = $region13
  $region12: #{dnn_forward.1} parent=0 // pred_region
    _
  $region13: #{dnn_forward.1} parent=0 // pred_fallthru
    _
  // Predicated region
  $region14: #{dnn_forward.1} parent=0 // pred_check
    _
  $region15: #{dnn_forward.1} parent=0 // pred_check_branch
    %24 = sbr.rel (0) target = $region17
  $region16: #{dnn_forward.1} parent=0 // pred_region
    _
  $region17: #{dnn_forward.1} parent=0 // pred_fallthru
    _
  // Predicated region
  $region18: #{dnn_forward.1} parent=0 // pred_check
    _
  $region19: #{dnn_forward.1} parent=0 // pred_check_branch
    %26 = sbr.rel (0) target = $region21
  $region20: #{dnn_forward.1} parent=0 // pred_region
    _
  $region21: #{dnn_forward.1} parent=0 // pred_fallthru
    _
  // Predicated region
  $region22: #{dnn_forward.1} parent=0 // pred_check
    _
  $region23: #{dnn_forward.1} parent=0 // pred_check_branch
    %28 = sbr.rel (0) target = $region25
  $region24: #{dnn_forward.1} parent=0 // pred_region
    _
  $region25: #{dnn_forward.1} parent=0 // pred_fallthru
    _
  // Predicated region
  $region26: #{dnn_forward.1} parent=0 // pred_check
    _
  $region27: #{dnn_forward.1} parent=0 // pred_check_branch
    %30 = sbr.rel (0) target = $region29
  $region28: #{dnn_forward.1} parent=0 // pred_region
    _
  $region29: #{dnn_forward.1} parent=0 // pred_fallthru
    _
  // Predicated region
  $region30: #{dnn_forward.1} parent=0 // pred_check
    _
  $region31: #{dnn_forward.1} parent=0 // pred_check_branch
    %32 = sbr.rel (0) target = $region33
  $region32: #{dnn_forward.1} parent=0 // pred_region
    _
  $region33: #{dnn_forward.1} parent=0 // pred_fallthru
    _
  // Predicated region
  $region34: #{dnn_forward.1} parent=0 // pred_check
    _
  $region35: #{dnn_forward.1} parent=0 // pred_check_branch
    %34 = sbr.rel (0) target = $region37
  $region36: #{dnn_forward.1} parent=0 // pred_region
    _
  $region37: #{dnn_forward.1} parent=0 // pred_fallthru
    _
  // Predicated region
  $region38: #{dnn_forward.1} parent=0 // pred_check
    _
  $region39: #{dnn_forward.1} parent=0 // pred_check_branch
    %36 = sbr.rel (0) target = $region41
  $region40: #{dnn_forward.1} parent=0 // pred_region
    _
  $region41: #{dnn_forward.1} parent=0 // pred_fallthru
    _
  %v38 = vld [vmem:[%s0] sm:$0xf]
  %v39 = vld [vmem:[%s0 + $0x4] sm:$0xf]
  %v40 = vld [vmem:[%s1] sm:$0xf]
  %v41 = vld [vmem:[%s1 + $0x4] sm:$0xf]
  %v42 = vld [vmem:[%s1 + $0x8] sm:$0xf]
  %v43 = vld [vmem:[%s1 + $0xc] sm:$0xf]
  %v44 = vld [vmem:[%s1 + $0x10] sm:$0xf]
  %v45 = vld [vmem:[%s1 + $0x14] sm:$0xf]
  %v46 = vld [vmem:[%s1 + $0x18] sm:$0xf]
  %v47 = vld [vmem:[%s1 + $0x1c] sm:$0xf]
  %v48 = vld [vmem:[%s1 + $0x20] sm:$0xf]
  %v49 = vld [vmem:[%s1 + $0x24] sm:$0xf]
  %v50 = vld [vmem:[%s1 + $0x28] sm:$0xf]
  %v51 = vld [vmem:[%s1 + $0x2c] sm:$0xf]
  %v52 = vld [vmem:[%s1 + $0x30] sm:$0xf]
  %v53 = vld [vmem:[%s1 + $0x34] sm:$0xf]
  %v54 = vld [vmem:[%s1 + $0x38] sm:$0xf]
  %v55 = vld [vmem:[%s1 + $0x3c] sm:$0xf]
  %v56 = vld [vmem:[%s2] sm:$0x1]
  %v58 = vlaneseq
  %v59 = vshrl.u32 %v58, 7
  %v60 = vsub.s32 0, %v59
  %v61 = vrot.slane %v56, %v60
  %v65 = vunpack.c.l.b16 %v38
  %v66 = vunpack.c.l.b16 %v39
  %v67 = vpack.c.b16 %v66, %v65
  %v85 = vunpack.c.l.b16 %v40
  %v86 = vunpack.c.l.b16 %v41
  %v87 = vunpack.c.l.b16 %v42
  %v88 = vunpack.c.l.b16 %v43
  %v89 = vunpack.c.l.b16 %v44
  %v90 = vunpack.c.l.b16 %v45
  %v91 = vunpack.c.l.b16 %v46
  %v92 = vunpack.c.l.b16 %v47
  %v93 = vunpack.c.l.b16 %v48
  %v94 = vunpack.c.l.b16 %v49
  %v95 = vunpack.c.l.b16 %v50
  %v96 = vunpack.c.l.b16 %v51
  %v97 = vunpack.c.l.b16 %v52
  %v98 = vunpack.c.l.b16 %v53
  %v99 = vunpack.c.l.b16 %v54
  %v100 = vunpack.c.l.b16 %v55
  %v101 = vpack.c.b16 %v86, %v85
  %v102 = vpack.c.b16 %v88, %v87
  %v103 = vpack.c.b16 %v90, %v89
  %v104 = vpack.c.b16 %v92, %v91
  %v105 = vpack.c.b16 %v94, %v93
  %v106 = vpack.c.b16 %v96, %v95
  %v107 = vpack.c.b16 %v98, %v97
  %v108 = vpack.c.b16 %v100, %v99
  %117 = vmatprep.subr.bf16.mxu0 0
  %118 = vmatpush1.bf16.msra.mxu0 %v101
  %119 = vmatprep.subr.bf16.mxu0 0
  %120 = vmatpush1.bf16.msra.mxu0 %v102
  %121 = vmatprep.subr.bf16.mxu0 0
  %122 = vmatpush1.bf16.msra.mxu0 %v103
  %123 = vmatprep.subr.bf16.mxu0 0
  %124 = vmatpush1.bf16.msra.mxu0 %v104
  %125 = vmatprep.subr.bf16.mxu0 0
  %126 = vmatpush1.bf16.msra.mxu0 %v105
  %127 = vmatprep.subr.bf16.mxu0 0
  %128 = vmatpush1.bf16.msra.mxu0 %v106
  %129 = vmatprep.subr.bf16.mxu0 0
  %130 = vmatpush1.bf16.msra.mxu0 %v107
  %131 = vmatprep.subr.bf16.mxu0 0
  %132 = vmatpush1.bf16.msra.mxu0 %v108
  %133 = vmatprep.subr.bf16.mxu0 0
  %134 = vmatpush1.bf16.msra.mxu0 0
  %135 = vmatprep.subr.bf16.mxu0 0
  %136 = vmatpush1.bf16.msra.mxu0 0
  %137 = vmatprep.subr.bf16.mxu0 0
  %138 = vmatpush1.bf16.msra.mxu0 0
  %139 = vmatprep.subr.bf16.mxu0 0
  %140 = vmatpush1.bf16.msra.mxu0 0
  %141 = vmatprep.subr.bf16.mxu0 0
  %142 = vmatpush1.bf16.msra.mxu0 0
  %143 = vmatprep.subr.bf16.mxu0 0
  %144 = vmatpush1.bf16.msra.mxu0 0
  %145 = vmatprep.subr.bf16.mxu0 0
  %146 = vmatpush1.bf16.msra.mxu0 0
  %147 = vmatprep.subr.bf16.mxu0 0
  %148 = vmatpush1.bf16.msra.mxu0 0
  %149 = vmatprep.mubr.bf16.mxu0 0
  %150 = vmatmul.mubr.bf16.gmra.mrb[0].mxu0 %v67
  %v151 = vpop.f32.mrb[0].mxu0
  %v152 = vadd.f32 %v61, %v151
  %v153 = vpop.f32.mrb[0].mxu0
  %v154 = vpop.f32.mrb[0].mxu0
  %v155 = vadd.f32 %v61, %v154
  %v156 = vpop.f32.mrb[0].mxu0
  %157 = vdwg.mxu0
  %vm158 = vcmp.ge.f32.partialorder %v152, 0.0
  %vm159 = vcmp.ge.f32.partialorder %v155, 0.0
  %v160 = vld [vmem:[%s3] sm:$0x1]
  %v162 = vlaneseq
  %v163 = vshrl.u32 %v162, 7
  %v164 = vsub.s32 0, %v163
  %v165 = vrot.slane %v160, %v164
  %v167 = vmul.f32 %v152, %v165
  %v168 = vmul.f32 %v155, %v165
  %v169 = vsel %vm158, %v152, %v167
  %v170 = vsel %vm159, %v155, %v168
  %v171 = vpack.c.bf16 %v170, %v169
  %v172 = vld [vmem:[%s4] sm:$0xf]
  %v173 = vld [vmem:[%s4 + $0x4] sm:$0xf]
  %v174 = vld [vmem:[%s4 + $0x8] sm:$0xf]
  %v175 = vld [vmem:[%s4 + $0xc] sm:$0xf]
  %v176 = vld [vmem:[%s4 + $0x10] sm:$0xf]
  %v177 = vld [vmem:[%s4 + $0x14] sm:$0xf]
  %v178 = vld [vmem:[%s4 + $0x18] sm:$0x7]
  %v179 = vld [vmem:[%s5] sm:$0x1]
  %v181 = vlaneseq
  %v182 = vshrl.u32 %v181, 7
  %v183 = vsub.s32 0, %v182
  %v184 = vrot.slane %v179, %v183
  %v193 = vunpack.c.l.b16 %v172
  %v194 = vunpack.c.l.b16 %v173
  %v195 = vunpack.c.l.b16 %v174
  %v196 = vunpack.c.l.b16 %v175
  %v197 = vunpack.c.l.b16 %v176
  %v198 = vunpack.c.l.b16 %v177
  %v199 = vunpack.c.l.b16 %v178
  %v200 = vpack.c.b16 %v194, %v193
  %v201 = vpack.c.b16 %v196, %v195
  %v202 = vpack.c.b16 %v198, %v197
  %v203 = vpack.c.b16 %v199, %v199
  %vm207 = vcmask 441344
  %v209 = vsel %vm207, %v171, 0
  %vm211 = vcmask 1042432
  %v213 = vsel %vm211, %v203, 0
  %215 = vmatprep.subr.bf16.mxu0 0
  %216 = vmatpush1.bf16.msra.mxu0 %v200
  %217 = vmatprep.subr.bf16.mxu0 0
  %218 = vmatpush1.bf16.msra.mxu0 %v201
  %219 = vmatprep.subr.bf16.mxu0 0
  %220 = vmatpush1.bf16.msra.mxu0 %v202
  %221 = vmatprep.subr.bf16.mxu0 0
  %222 = vmatpush1.bf16.msra.mxu0 %v213
  %223 = vmatprep.subr.bf16.mxu0 0
  %224 = vmatpush1.bf16.msra.mxu0 0
  %225 = vmatprep.subr.bf16.mxu0 0
  %226 = vmatpush1.bf16.msra.mxu0 0
  %227 = vmatprep.subr.bf16.mxu0 0
  %228 = vmatpush1.bf16.msra.mxu0 0
  %229 = vmatprep.subr.bf16.mxu0 0
  %230 = vmatpush1.bf16.msra.mxu0 0
  %231 = vmatprep.subr.bf16.mxu0 0
  %232 = vmatpush1.bf16.msra.mxu0 0
  %233 = vmatprep.subr.bf16.mxu0 0
  %234 = vmatpush1.bf16.msra.mxu0 0
  %235 = vmatprep.subr.bf16.mxu0 0
  %236 = vmatpush1.bf16.msra.mxu0 0
  %237 = vmatprep.subr.bf16.mxu0 0
  %238 = vmatpush1.bf16.msra.mxu0 0
  %239 = vmatprep.subr.bf16.mxu0 0
  %240 = vmatpush1.bf16.msra.mxu0 0
  %241 = vmatprep.subr.bf16.mxu0 0
  %242 = vmatpush1.bf16.msra.mxu0 0
  %243 = vmatprep.subr.bf16.mxu0 0
  %244 = vmatpush1.bf16.msra.mxu0 0
  %245 = vmatprep.subr.bf16.mxu0 0
  %246 = vmatpush1.bf16.msra.mxu0 0
  %247 = vmatprep.mubr.bf16.mxu0 0
  %248 = vmatmul.mubr.bf16.gmra.mrb[0].mxu0 %v209
  %v249 = vpop.f32.mrb[0].mxu0
  %v250 = vadd.f32 %v184, %v249
  %v251 = vpop.f32.mrb[0].mxu0
  %v252 = vpop.f32.mrb[0].mxu0
  %v253 = vadd.f32 %v184, %v252
  %v254 = vpop.f32.mrb[0].mxu0
  %255 = vdwg.mxu0
  %vm256 = vcmp.ge.f32.partialorder %v250, 0.0
  %vm257 = vcmp.ge.f32.partialorder %v253, 0.0
  %v258 = vmul.f32 %v250, 0.01
  %v259 = vmul.f32 %v253, 0.01
  %v260 = vsel %vm256, %v250, %v258
  %v261 = vsel %vm257, %v253, %v259
  %v262 = vpack.c.bf16 %v261, %v260
  %v263 = vld [vmem:[%s6] sm:$0xf]
  %v264 = vld [vmem:[%s6 + $0x4] sm:$0xf]
  %v265 = vld [vmem:[%s6 + $0x8] sm:$0xf]
  %v266 = vld [vmem:[%s6 + $0xc] sm:$0xf]
  %v267 = vld [vmem:[%s7] sm:$0x1]
  %v268 = vlaneseq
  %v269 = vshrl.u32 %v268, 7
  %v270 = vsub.s32 0, %v269
  %v271 = vrot.slane %v267, %v270
  %v276 = vunpack.c.l.b16 %v263
  %v277 = vunpack.c.l.b16 %v264
  %v278 = vunpack.c.l.b16 %v265
  %v279 = vunpack.c.l.b16 %v266
  %v280 = vpack.c.b16 %v277, %v276
  %v281 = vpack.c.b16 %v279, %v278
  %vm284 = vcmask 261120
  %v286 = vsel %vm284, %v262, 0
  %288 = vmatprep.subr.bf16.mxu0 0
  %289 = vmatpush1.bf16.msra.mxu0 %v280
  %290 = vmatprep.subr.bf16.mxu0 0
  %291 = vmatpush1.bf16.msra.mxu0 %v281
  %292 = vmatprep.subr.bf16.mxu0 0
  %293 = vmatpush1.bf16.msra.mxu0 0
  %294 = vmatprep.subr.bf16.mxu0 0
  %295 = vmatpush1.bf16.msra.mxu0 0
  %296 = vmatprep.subr.bf16.mxu0 0
  %297 = vmatpush1.bf16.msra.mxu0 0
  %298 = vmatprep.subr.bf16.mxu0 0
  %299 = vmatpush1.bf16.msra.mxu0 0
  %300 = vmatprep.subr.bf16.mxu0 0
  %301 = vmatpush1.bf16.msra.mxu0 0
  %302 = vmatprep.subr.bf16.mxu0 0
  %303 = vmatpush1.bf16.msra.mxu0 0
  %304 = vmatprep.subr.bf16.mxu0 0
  %305 = vmatpush1.bf16.msra.mxu0 0
  %306 = vmatprep.subr.bf16.mxu0 0
  %307 = vmatpush1.bf16.msra.mxu0 0
  %308 = vmatprep.subr.bf16.mxu0 0
  %309 = vmatpush1.bf16.msra.mxu0 0
  %310 = vmatprep.subr.bf16.mxu0 0
  %311 = vmatpush1.bf16.msra.mxu0 0
  %312 = vmatprep.subr.bf16.mxu0 0
  %313 = vmatpush1.bf16.msra.mxu0 0
  %314 = vmatprep.subr.bf16.mxu0 0
  %315 = vmatpush1.bf16.msra.mxu0 0
  %316 = vmatprep.subr.bf16.mxu0 0
  %317 = vmatpush1.bf16.msra.mxu0 0
  %318 = vmatprep.subr.bf16.mxu0 0
  %319 = vmatpush1.bf16.msra.mxu0 0
  %320 = vmatprep.mubr.bf16.mxu0 0
  %321 = vmatmul.mubr.bf16.gmra.mrb[0].mxu0 %v286
  %v322 = vpop.f32.mrb[0].mxu0
  %v323 = vadd.f32 %v271, %v322
  %v324 = vpop.f32.mrb[0].mxu0
  %v325 = vpop.f32.mrb[0].mxu0
  %v326 = vadd.f32 %v271, %v325
  %v327 = vpop.f32.mrb[0].mxu0
  %328 = vdwg.mxu0
  %vm329 = vcmp.ge.f32.partialorder %v323, 0.0
  %vm330 = vcmp.ge.f32.partialorder %v326, 0.0
  %v331 = vmul.f32 %v323, 0.01
  %v332 = vmul.f32 %v326, 0.01
  %v333 = vsel %vm329, %v323, %v331
  %v334 = vsel %vm330, %v326, %v332
  %v335 = vpack.c.bf16 %v334, %v333
  %s336 = scalar_lea.vmem %s6, 16
  %v337 = vld [vmem:[%s336] sm:$0xf]
  %v338 = vld [vmem:[%s336 + $0x4] sm:$0xf]
  %v339 = vld [vmem:[%s336 + $0x8] sm:$0xf]
  %v340 = vld [vmem:[%s336 + $0xc] sm:$0xf]
  %v341 = vld [vmem:[%s7 + $0x1] sm:$0x1]
  %v342 = vlaneseq
  %v343 = vshrl.u32 %v342, 7
  %v344 = vsub.s32 0, %v343
  %v345 = vrot.slane %v341, %v344
  %v350 = vunpack.c.l.b16 %v337
  %v351 = vunpack.c.l.b16 %v338
  %v352 = vunpack.c.l.b16 %v339
  %v353 = vunpack.c.l.b16 %v340
  %v354 = vpack.c.b16 %v351, %v350
  %v355 = vpack.c.b16 %v353, %v352
  %v359 = vsel %vm284, %v335, 0
  %361 = vmatprep.subr.bf16.mxu0 0
  %362 = vmatpush1.bf16.msra.mxu0 %v354
  %363 = vmatprep.subr.bf16.mxu0 0
  %364 = vmatpush1.bf16.msra.mxu0 %v355
  %365 = vmatprep.subr.bf16.mxu0 0
  %366 = vmatpush1.bf16.msra.mxu0 0
  %367 = vmatprep.subr.bf16.mxu0 0
  %368 = vmatpush1.bf16.msra.mxu0 0
  %369 = vmatprep.subr.bf16.mxu0 0
  %370 = vmatpush1.bf16.msra.mxu0 0
  %371 = vmatprep.subr.bf16.mxu0 0
  %372 = vmatpush1.bf16.msra.mxu0 0
  %373 = vmatprep.subr.bf16.mxu0 0
  %374 = vmatpush1.bf16.msra.mxu0 0
  %375 = vmatprep.subr.bf16.mxu0 0
  %376 = vmatpush1.bf16.msra.mxu0 0
  %377 = vmatprep.subr.bf16.mxu0 0
  %378 = vmatpush1.bf16.msra.mxu0 0
  %379 = vmatprep.subr.bf16.mxu0 0
  %380 = vmatpush1.bf16.msra.mxu0 0
  %381 = vmatprep.subr.bf16.mxu0 0
  %382 = vmatpush1.bf16.msra.mxu0 0
  %383 = vmatprep.subr.bf16.mxu0 0
  %384 = vmatpush1.bf16.msra.mxu0 0
  %385 = vmatprep.subr.bf16.mxu0 0
  %386 = vmatpush1.bf16.msra.mxu0 0
  %387 = vmatprep.subr.bf16.mxu0 0
  %388 = vmatpush1.bf16.msra.mxu0 0
  %389 = vmatprep.subr.bf16.mxu0 0
  %390 = vmatpush1.bf16.msra.mxu0 0
  %391 = vmatprep.subr.bf16.mxu0 0
  %392 = vmatpush1.bf16.msra.mxu0 0
  %393 = vmatprep.mubr.bf16.mxu0 0
  %394 = vmatmul.mubr.bf16.gmra.mrb[0].mxu0 %v359
  %v395 = vpop.f32.mrb[0].mxu0
  %v396 = vadd.f32 %v345, %v395
  %v397 = vpop.f32.mrb[0].mxu0
  %v398 = vpop.f32.mrb[0].mxu0
  %v399 = vadd.f32 %v345, %v398
  %v400 = vpop.f32.mrb[0].mxu0
  %401 = vdwg.mxu0
  %vm402 = vcmp.ge.f32.partialorder %v396, 0.0
  %vm403 = vcmp.ge.f32.partialorder %v399, 0.0
  %v404 = vmul.f32 %v396, 0.01
  %v405 = vmul.f32 %v399, 0.01
  %v406 = vsel %vm402, %v396, %v404
  %v407 = vsel %vm403, %v399, %v405
  %v408 = vpack.c.bf16 %v407, %v406
  %s409 = scalar_lea.vmem %s6, 32
  %v410 = vld [vmem:[%s409] sm:$0xf]
  %v411 = vld [vmem:[%s409 + $0x4] sm:$0xf]
  %v412 = vld [vmem:[%s409 + $0x8] sm:$0xf]
  %v413 = vld [vmem:[%s409 + $0xc] sm:$0xf]
  %v414 = vld [vmem:[%s7 + $0x2] sm:$0x1]
  %v415 = vlaneseq
  %v416 = vshrl.u32 %v415, 7
  %v417 = vsub.s32 0, %v416
  %v418 = vrot.slane %v414, %v417
  %v423 = vunpack.c.l.b16 %v410
  %v424 = vunpack.c.l.b16 %v411
  %v425 = vunpack.c.l.b16 %v412
  %v426 = vunpack.c.l.b16 %v413
  %v427 = vpack.c.b16 %v424, %v423
  %v428 = vpack.c.b16 %v426, %v425
  %v432 = vsel %vm284, %v408, 0
  %434 = vmatprep.subr.bf16.mxu0 0
  %435 = vmatpush1.bf16.msra.mxu0 %v427
  %436 = vmatprep.subr.bf16.mxu0 0
  %437 = vmatpush1.bf16.msra.mxu0 %v428
  %438 = vmatprep.subr.bf16.mxu0 0
  %439 = vmatpush1.bf16.msra.mxu0 0
  %440 = vmatprep.subr.bf16.mxu0 0
  %441 = vmatpush1.bf16.msra.mxu0 0
  %442 = vmatprep.subr.bf16.mxu0 0
  %443 = vmatpush1.bf16.msra.mxu0 0
  %444 = vmatprep.subr.bf16.mxu0 0
  %445 = vmatpush1.bf16.msra.mxu0 0
  %446 = vmatprep.subr.bf16.mxu0 0
  %447 = vmatpush1.bf16.msra.mxu0 0
  %448 = vmatprep.subr.bf16.mxu0 0
  %449 = vmatpush1.bf16.msra.mxu0 0
  %450 = vmatprep.subr.bf16.mxu0 0
  %451 = vmatpush1.bf16.msra.mxu0 0
  %452 = vmatprep.subr.bf16.mxu0 0
  %453 = vmatpush1.bf16.msra.mxu0 0
  %454 = vmatprep.subr.bf16.mxu0 0
  %455 = vmatpush1.bf16.msra.mxu0 0
  %456 = vmatprep.subr.bf16.mxu0 0
  %457 = vmatpush1.bf16.msra.mxu0 0
  %458 = vmatprep.subr.bf16.mxu0 0
  %459 = vmatpush1.bf16.msra.mxu0 0
  %460 = vmatprep.subr.bf16.mxu0 0
  %461 = vmatpush1.bf16.msra.mxu0 0
  %462 = vmatprep.subr.bf16.mxu0 0
  %463 = vmatpush1.bf16.msra.mxu0 0
  %464 = vmatprep.subr.bf16.mxu0 0
  %465 = vmatpush1.bf16.msra.mxu0 0
  %466 = vmatprep.mubr.bf16.mxu0 0
  %467 = vmatmul.mubr.bf16.gmra.mrb[0].mxu0 %v432
  %v468 = vpop.f32.mrb[0].mxu0
  %v469 = vadd.f32 %v418, %v468
  %v470 = vpop.f32.mrb[0].mxu0
  %v471 = vpop.f32.mrb[0].mxu0
  %v472 = vadd.f32 %v418, %v471
  %v473 = vpop.f32.mrb[0].mxu0
  %474 = vdwg.mxu0
  %vm475 = vcmp.ge.f32.partialorder %v469, 0.0
  %vm476 = vcmp.ge.f32.partialorder %v472, 0.0
  %v477 = vmul.f32 %v469, 0.01
  %v478 = vmul.f32 %v472, 0.01
  %v479 = vsel %vm475, %v469, %v477
  %v480 = vsel %vm476, %v472, %v478
  %v481 = vpack.c.bf16 %v480, %v479
  %s482 = scalar_lea.vmem %s6, 48
  %v483 = vld [vmem:[%s482] sm:$0xf]
  %v484 = vld [vmem:[%s482 + $0x4] sm:$0xf]
  %v485 = vld [vmem:[%s482 + $0x8] sm:$0xf]
  %v486 = vld [vmem:[%s482 + $0xc] sm:$0xf]
  %v487 = vld [vmem:[%s7 + $0x3] sm:$0x1]
  %v488 = vlaneseq
  %v489 = vshrl.u32 %v488, 7
  %v490 = vsub.s32 0, %v489
  %v491 = vrot.slane %v487, %v490
  %v496 = vunpack.c.l.b16 %v483
  %v497 = vunpack.c.l.b16 %v484
  %v498 = vunpack.c.l.b16 %v485
  %v499 = vunpack.c.l.b16 %v486
  %v500 = vpack.c.b16 %v497, %v496
  %v501 = vpack.c.b16 %v499, %v498
  %v505 = vsel %vm284, %v481, 0
  %507 = vmatprep.subr.bf16.mxu0 0
  %508 = vmatpush1.bf16.msra.mxu0 %v500
  %509 = vmatprep.subr.bf16.mxu0 0
  %510 = vmatpush1.bf16.msra.mxu0 %v501
  %511 = vmatprep.subr.bf16.mxu0 0
  %512 = vmatpush1.bf16.msra.mxu0 0
  %513 = vmatprep.subr.bf16.mxu0 0
  %514 = vmatpush1.bf16.msra.mxu0 0
  %515 = vmatprep.subr.bf16.mxu0 0
  %516 = vmatpush1.bf16.msra.mxu0 0
  %517 = vmatprep.subr.bf16.mxu0 0
  %518 = vmatpush1.bf16.msra.mxu0 0
  %519 = vmatprep.subr.bf16.mxu0 0
  %520 = vmatpush1.bf16.msra.mxu0 0
  %521 = vmatprep.subr.bf16.mxu0 0
  %522 = vmatpush1.bf16.msra.mxu0 0
  %523 = vmatprep.subr.bf16.mxu0 0
  %524 = vmatpush1.bf16.msra.mxu0 0
  %525 = vmatprep.subr.bf16.mxu0 0
  %526 = vmatpush1.bf16.msra.mxu0 0
  %527 = vmatprep.subr.bf16.mxu0 0
  %528 = vmatpush1.bf16.msra.mxu0 0
  %529 = vmatprep.subr.bf16.mxu0 0
  %530 = vmatpush1.bf16.msra.mxu0 0
  %531 = vmatprep.subr.bf16.mxu0 0
  %532 = vmatpush1.bf16.msra.mxu0 0
  %533 = vmatprep.subr.bf16.mxu0 0
  %534 = vmatpush1.bf16.msra.mxu0 0
  %535 = vmatprep.subr.bf16.mxu0 0
  %536 = vmatpush1.bf16.msra.mxu0 0
  %537 = vmatprep.subr.bf16.mxu0 0
  %538 = vmatpush1.bf16.msra.mxu0 0
  %539 = vmatprep.mubr.bf16.mxu0 0
  %540 = vmatmul.mubr.bf16.gmra.mrb[0].mxu0 %v505
  %v541 = vpop.f32.mrb[0].mxu0
  %v542 = vadd.f32 %v491, %v541
  %v543 = vpop.f32.mrb[0].mxu0
  %v544 = vpop.f32.mrb[0].mxu0
  %v545 = vadd.f32 %v491, %v544
  %v546 = vpop.f32.mrb[0].mxu0
  %547 = vdwg.mxu0
  %vm548 = vcmp.ge.f32.partialorder %v542, 0.0
  %vm549 = vcmp.ge.f32.partialorder %v545, 0.0
  %v550 = vmul.f32 %v542, 0.01
  %v551 = vmul.f32 %v545, 0.01
  %v552 = vsel %vm548, %v542, %v550
  %v553 = vsel %vm549, %v545, %v551
  %v554 = vpack.c.bf16 %v553, %v552
  %s555 = scalar_lea.vmem %s6, 64
  %v556 = vld [vmem:[%s555] sm:$0xf]
  %v557 = vld [vmem:[%s555 + $0x4] sm:$0xf]
  %v558 = vld [vmem:[%s555 + $0x8] sm:$0xf]
  %v559 = vld [vmem:[%s555 + $0xc] sm:$0xf]
  %v560 = vld [vmem:[%s7 + $0x4] sm:$0x1]
  %v561 = vlaneseq
  %v562 = vshrl.u32 %v561, 7
  %v563 = vsub.s32 0, %v562
  %v564 = vrot.slane %v560, %v563
  %v569 = vunpack.c.l.b16 %v556
  %v570 = vunpack.c.l.b16 %v557
  %v571 = vunpack.c.l.b16 %v558
  %v572 = vunpack.c.l.b16 %v559
  %v573 = vpack.c.b16 %v570, %v569
  %v574 = vpack.c.b16 %v572, %v571
  %v578 = vsel %vm284, %v554, 0
  %580 = vmatprep.subr.bf16.mxu0 0
  %581 = vmatpush1.bf16.msra.mxu0 %v573
  %582 = vmatprep.subr.bf16.mxu0 0
  %583 = vmatpush1.bf16.msra.mxu0 %v574
  %584 = vmatprep.subr.bf16.mxu0 0
  %585 = vmatpush1.bf16.msra.mxu0 0
  %586 = vmatprep.subr.bf16.mxu0 0
  %587 = vmatpush1.bf16.msra.mxu0 0
  %588 = vmatprep.subr.bf16.mxu0 0
  %589 = vmatpush1.bf16.msra.mxu0 0
  %590 = vmatprep.subr.bf16.mxu0 0
  %591 = vmatpush1.bf16.msra.mxu0 0
  %592 = vmatprep.subr.bf16.mxu0 0
  %593 = vmatpush1.bf16.msra.mxu0 0
  %594 = vmatprep.subr.bf16.mxu0 0
  %595 = vmatpush1.bf16.msra.mxu0 0
  %596 = vmatprep.subr.bf16.mxu0 0
  %597 = vmatpush1.bf16.msra.mxu0 0
  %598 = vmatprep.subr.bf16.mxu0 0
  %599 = vmatpush1.bf16.msra.mxu0 0
  %600 = vmatprep.subr.bf16.mxu0 0
  %601 = vmatpush1.bf16.msra.mxu0 0
  %602 = vmatprep.subr.bf16.mxu0 0
  %603 = vmatpush1.bf16.msra.mxu0 0
  %604 = vmatprep.subr.bf16.mxu0 0
  %605 = vmatpush1.bf16.msra.mxu0 0
  %606 = vmatprep.subr.bf16.mxu0 0
  %607 = vmatpush1.bf16.msra.mxu0 0
  %608 = vmatprep.subr.bf16.mxu0 0
  %609 = vmatpush1.bf16.msra.mxu0 0
  %610 = vmatprep.subr.bf16.mxu0 0
  %611 = vmatpush1.bf16.msra.mxu0 0
  %612 = vmatprep.mubr.bf16.mxu0 0
  %613 = vmatmul.mubr.bf16.gmra.mrb[0].mxu0 %v578
  %v614 = vpop.f32.mrb[0].mxu0
  %v615 = vadd.f32 %v564, %v614
  %v616 = vpop.f32.mrb[0].mxu0
  %v617 = vpop.f32.mrb[0].mxu0
  %v618 = vadd.f32 %v564, %v617
  %v619 = vpop.f32.mrb[0].mxu0
  %620 = vdwg.mxu0
  %vm621 = vcmp.ge.f32.partialorder %v615, 0.0
  %vm622 = vcmp.ge.f32.partialorder %v618, 0.0
  %v623 = vmul.f32 %v615, 0.01
  %v624 = vmul.f32 %v618, 0.01
  %v625 = vsel %vm621, %v615, %v623
  %v626 = vsel %vm622, %v618, %v624
  %v627 = vpack.c.bf16 %v626, %v625
  %s628 = scalar_lea.vmem %s6, 80
  %v629 = vld [vmem:[%s628] sm:$0xf]
  %v630 = vld [vmem:[%s628 + $0x4] sm:$0xf]
  %v631 = vld [vmem:[%s628 + $0x8] sm:$0xf]
  %v632 = vld [vmem:[%s628 + $0xc] sm:$0xf]
  %v633 = vld [vmem:[%s7 + $0x5] sm:$0x1]
  %v634 = vlaneseq
  %v635 = vshrl.u32 %v634, 7
  %v636 = vsub.s32 0, %v635
  %v637 = vrot.slane %v633, %v636
  %v642 = vunpack.c.l.b16 %v629
  %v643 = vunpack.c.l.b16 %v630
  %v644 = vunpack.c.l.b16 %v631
  %v645 = vunpack.c.l.b16 %v632
  %v646 = vpack.c.b16 %v643, %v642
  %v647 = vpack.c.b16 %v645, %v644
  %v651 = vsel %vm284, %v627, 0
  %653 = vmatprep.subr.bf16.mxu0 0
  %654 = vmatpush1.bf16.msra.mxu0 %v646
  %655 = vmatprep.subr.bf16.mxu0 0
  %656 = vmatpush1.bf16.msra.mxu0 %v647
  %657 = vmatprep.subr.bf16.mxu0 0
  %658 = vmatpush1.bf16.msra.mxu0 0
  %659 = vmatprep.subr.bf16.mxu0 0
  %660 = vmatpush1.bf16.msra.mxu0 0
  %661 = vmatprep.subr.bf16.mxu0 0
  %662 = vmatpush1.bf16.msra.mxu0 0
  %663 = vmatprep.subr.bf16.mxu0 0
  %664 = vmatpush1.bf16.msra.mxu0 0
  %665 = vmatprep.subr.bf16.mxu0 0
  %666 = vmatpush1.bf16.msra.mxu0 0
  %667 = vmatprep.subr.bf16.mxu0 0
  %668 = vmatpush1.bf16.msra.mxu0 0
  %669 = vmatprep.subr.bf16.mxu0 0
  %670 = vmatpush1.bf16.msra.mxu0 0
  %671 = vmatprep.subr.bf16.mxu0 0
  %672 = vmatpush1.bf16.msra.mxu0 0
  %673 = vmatprep.subr.bf16.mxu0 0
  %674 = vmatpush1.bf16.msra.mxu0 0
  %675 = vmatprep.subr.bf16.mxu0 0
  %676 = vmatpush1.bf16.msra.mxu0 0
  %677 = vmatprep.subr.bf16.mxu0 0
  %678 = vmatpush1.bf16.msra.mxu0 0
  %679 = vmatprep.subr.bf16.mxu0 0
  %680 = vmatpush1.bf16.msra.mxu0 0
  %681 = vmatprep.subr.bf16.mxu0 0
  %682 = vmatpush1.bf16.msra.mxu0 0
  %683 = vmatprep.subr.bf16.mxu0 0
  %684 = vmatpush1.bf16.msra.mxu0 0
  %685 = vmatprep.mubr.bf16.mxu0 0
  %686 = vmatmul.mubr.bf16.gmra.mrb[0].mxu0 %v651
  %v687 = vpop.f32.mrb[0].mxu0
  %v688 = vadd.f32 %v637, %v687
  %v689 = vpop.f32.mrb[0].mxu0
  %v690 = vpop.f32.mrb[0].mxu0
  %v691 = vadd.f32 %v637, %v690
  %v692 = vpop.f32.mrb[0].mxu0
  %693 = vdwg.mxu0
  %vm694 = vcmp.ge.f32.partialorder %v688, 0.0
  %vm695 = vcmp.ge.f32.partialorder %v691, 0.0
  %v696 = vmul.f32 %v688, 0.01
  %v697 = vmul.f32 %v691, 0.01
  %v698 = vsel %vm694, %v688, %v696
  %v699 = vsel %vm695, %v691, %v697
  %v700 = vpack.c.bf16 %v699, %v698
  %s701 = scalar_lea.vmem %s6, 96
  %v702 = vld [vmem:[%s701] sm:$0xf]
  %v703 = vld [vmem:[%s701 + $0x4] sm:$0xf]
  %v704 = vld [vmem:[%s701 + $0x8] sm:$0xf]
  %v705 = vld [vmem:[%s701 + $0xc] sm:$0xf]
  %v706 = vld [vmem:[%s7 + $0x6] sm:$0x1]
  %v707 = vlaneseq
  %v708 = vshrl.u32 %v707, 7
  %v709 = vsub.s32 0, %v708
  %v710 = vrot.slane %v706, %v709
  %v715 = vunpack.c.l.b16 %v702
  %v716 = vunpack.c.l.b16 %v703
  %v717 = vunpack.c.l.b16 %v704
  %v718 = vunpack.c.l.b16 %v705
  %v719 = vpack.c.b16 %v716, %v715
  %v720 = vpack.c.b16 %v718, %v717
  %v724 = vsel %vm284, %v700, 0
  %726 = vmatprep.subr.bf16.mxu0 0
  %727 = vmatpush1.bf16.msra.mxu0 %v719
  %728 = vmatprep.subr.bf16.mxu0 0
  %729 = vmatpush1.bf16.msra.mxu0 %v720
  %730 = vmatprep.subr.bf16.mxu0 0
  %731 = vmatpush1.bf16.msra.mxu0 0
  %732 = vmatprep.subr.bf16.mxu0 0
  %733 = vmatpush1.bf16.msra.mxu0 0
  %734 = vmatprep.subr.bf16.mxu0 0
  %735 = vmatpush1.bf16.msra.mxu0 0
  %736 = vmatprep.subr.bf16.mxu0 0
  %737 = vmatpush1.bf16.msra.mxu0 0
  %738 = vmatprep.subr.bf16.mxu0 0
  %739 = vmatpush1.bf16.msra.mxu0 0
  %740 = vmatprep.subr.bf16.mxu0 0
  %741 = vmatpush1.bf16.msra.mxu0 0
  %742 = vmatprep.subr.bf16.mxu0 0
  %743 = vmatpush1.bf16.msra.mxu0 0
  %744 = vmatprep.subr.bf16.mxu0 0
  %745 = vmatpush1.bf16.msra.mxu0 0
  %746 = vmatprep.subr.bf16.mxu0 0
  %747 = vmatpush1.bf16.msra.mxu0 0
  %748 = vmatprep.subr.bf16.mxu0 0
  %749 = vmatpush1.bf16.msra.mxu0 0
  %750 = vmatprep.subr.bf16.mxu0 0
  %751 = vmatpush1.bf16.msra.mxu0 0
  %752 = vmatprep.subr.bf16.mxu0 0
  %753 = vmatpush1.bf16.msra.mxu0 0
  %754 = vmatprep.subr.bf16.mxu0 0
  %755 = vmatpush1.bf16.msra.mxu0 0
  %756 = vmatprep.subr.bf16.mxu0 0
  %757 = vmatpush1.bf16.msra.mxu0 0
  %758 = vmatprep.mubr.bf16.mxu0 0
  %759 = vmatmul.mubr.bf16.gmra.mrb[0].mxu0 %v724
  %v760 = vpop.f32.mrb[0].mxu0
  %v761 = vadd.f32 %v710, %v760
  %v762 = vpop.f32.mrb[0].mxu0
  %v763 = vpop.f32.mrb[0].mxu0
  %v764 = vadd.f32 %v710, %v763
  %v765 = vpop.f32.mrb[0].mxu0
  %766 = vdwg.mxu0
  %vm767 = vcmp.ge.f32.partialorder %v761, 0.0
  %vm768 = vcmp.ge.f32.partialorder %v764, 0.0
  %v769 = vmul.f32 %v761, 0.01
  %v770 = vmul.f32 %v764, 0.01
  %v771 = vsel %vm767, %v761, %v769
  %v772 = vsel %vm768, %v764, %v770
  %v773 = vpack.c.bf16 %v772, %v771
  %s774 = scalar_lea.vmem %s6, 112
  %v775 = vld [vmem:[%s774] sm:$0xf]
  %v776 = vld [vmem:[%s774 + $0x4] sm:$0xf]
  %v777 = vld [vmem:[%s774 + $0x8] sm:$0xf]
  %v778 = vld [vmem:[%s774 + $0xc] sm:$0xf]
  %v779 = vld [vmem:[%s7 + $0x7] sm:$0x1]
  %v780 = vlaneseq
  %v781 = vshrl.u32 %v780, 7
  %v782 = vsub.s32 0, %v781
  %v783 = vrot.slane %v779, %v782
  %v788 = vunpack.c.l.b16 %v775
  %v789 = vunpack.c.l.b16 %v776
  %v790 = vunpack.c.l.b16 %v777
  %v791 = vunpack.c.l.b16 %v778
  %v792 = vpack.c.b16 %v789, %v788
  %v793 = vpack.c.b16 %v791, %v790
  %v797 = vsel %vm284, %v773, 0
  %799 = vmatprep.subr.bf16.mxu0 0
  %800 = vmatpush1.bf16.msra.mxu0 %v792
  %801 = vmatprep.subr.bf16.mxu0 0
  %802 = vmatpush1.bf16.msra.mxu0 %v793
  %803 = vmatprep.subr.bf16.mxu0 0
  %804 = vmatpush1.bf16.msra.mxu0 0
  %805 = vmatprep.subr.bf16.mxu0 0
  %806 = vmatpush1.bf16.msra.mxu0 0
  %807 = vmatprep.subr.bf16.mxu0 0
  %808 = vmatpush1.bf16.msra.mxu0 0
  %809 = vmatprep.subr.bf16.mxu0 0
  %810 = vmatpush1.bf16.msra.mxu0 0
  %811 = vmatprep.subr.bf16.mxu0 0
  %812 = vmatpush1.bf16.msra.mxu0 0
  %813 = vmatprep.subr.bf16.mxu0 0
  %814 = vmatpush1.bf16.msra.mxu0 0
  %815 = vmatprep.subr.bf16.mxu0 0
  %816 = vmatpush1.bf16.msra.mxu0 0
  %817 = vmatprep.subr.bf16.mxu0 0
  %818 = vmatpush1.bf16.msra.mxu0 0
  %819 = vmatprep.subr.bf16.mxu0 0
  %820 = vmatpush1.bf16.msra.mxu0 0
  %821 = vmatprep.subr.bf16.mxu0 0
  %822 = vmatpush1.bf16.msra.mxu0 0
  %823 = vmatprep.subr.bf16.mxu0 0
  %824 = vmatpush1.bf16.msra.mxu0 0
  %825 = vmatprep.subr.bf16.mxu0 0
  %826 = vmatpush1.bf16.msra.mxu0 0
  %827 = vmatprep.subr.bf16.mxu0 0
  %828 = vmatpush1.bf16.msra.mxu0 0
  %829 = vmatprep.subr.bf16.mxu0 0
  %830 = vmatpush1.bf16.msra.mxu0 0
  %831 = vmatprep.mubr.bf16.mxu0 0
  %832 = vmatmul.mubr.bf16.gmra.mrb[0].mxu0 %v797
  %v833 = vpop.f32.mrb[0].mxu0
  %v834 = vadd.f32 %v783, %v833
  %v835 = vpop.f32.mrb[0].mxu0
  %v836 = vpop.f32.mrb[0].mxu0
  %v837 = vadd.f32 %v783, %v836
  %v838 = vpop.f32.mrb[0].mxu0
  %839 = vdwg.mxu0
  %vm840 = vcmp.ge.f32.partialorder %v834, 0.0
  %vm841 = vcmp.ge.f32.partialorder %v837, 0.0
  %v842 = vmul.f32 %v834, 0.01
  %v843 = vmul.f32 %v837, 0.01
  %v844 = vsel %vm840, %v834, %v842
  %v845 = vsel %vm841, %v837, %v843
  %v846 = vld [vmem:[%s8] sm:$0x1]
  %v848 = vlaneseq
  %v849 = vshrl.u32 %v848, 7
  %v850 = vsub.s32 0, %v849
  %v851 = vrot.slane %v846, %v850
  %v853 = vmul.f32 %v844, %v851
  %v854 = vmul.f32 %v845, %v851
  %v855 = vsel %vm284, %v853, 0.0
  %856 = vadd.xlane.f32.xlu0 %v855
  %v857 = vpop.xlane.xlu0 %856
  %v858 = vsel %vm284, %v854, 0.0
  %859 = vadd.xlane.f32.xlu0 %v858
  %v860 = vpop.xlane.xlu0 %859
  %v861 = vld [vmem:[#allocation2] sm:$0x1]
  %v863 = vlaneseq
  %v864 = vshrl.u32 %v863, 7
  %v865 = vsub.s32 0, %v864
  %v866 = vrot.slane %v861, %v865
  %v868 = vadd.f32 %v857, %v866
  %v869 = vadd.f32 %v860, %v866
  %vm870 = vcmask 7168
  %871 = vst.msk [vmem:[%s10] sm:$0xff] %vm870, %v868
  %872 = vst.msk [vmem:[%s10 + $0x8] sm:$0xff] %vm870, %v869
  // Predicated region
  $region42: #{dnn_forward.1} parent=0 // pred_check
    _
  $region43: #{dnn_forward.1} parent=0 // pred_check_branch
    %874 = sbr.rel (0) target = $region45
  $region44: #{dnn_forward.1} parent=0 // pred_region
    _
  $region45: #{dnn_forward.1} parent=0 // pred_fallthru
    _
  // Predicated region
  $region46: #{dnn_forward.1} parent=0 // pred_check
    _
  $region47: #{dnn_forward.1} parent=0 // pred_check_branch
    %876 = sbr.rel (0) target = $region49
  $region48: #{dnn_forward.1} parent=0 // pred_region
    _
  $region49: #{dnn_forward.1} parent=0 // pred_fallthru
    _

</llo_original>
